<compile_context>
chip_gen: v5e
topology: v5e:2x2
jax: 0.10.0
libtpu: 0.0.40
codegen_flags: <defaults>
</compile_context>

<pallas_src>
import math

import jax
import jax.numpy as jnp
from jax.experimental import pallas as pl
from jax.experimental.pallas import tpu as pltpu


# --------------------------------------------------------------------------- #
# Kernels
# --------------------------------------------------------------------------- #
def _make_vmem_gather_kernel(n_valid, tm, unroll, guard):
    """Tables resident in VMEM; gather via dynamic row reads (no DMA)."""

    def kernel(ids_ref, pos_ref,          # scalar prefetch (SMEM), (n_pad,) int32
               tok_ref, etab_ref,         # (V, D) / (ML+1, D) tables, VMEM-resident
               x_ref, e_ref):             # (tm, D) pipelined output blocks
        base = pl.program_id(0) * tm

        @pl.loop(0, tm // unroll)
        def _chunk(c):
            for j in range(unroll):       # partial unroll -> scheduler visibility
                r = c * unroll + j

                def gather_row(r=r):
                    t = ids_ref[base + r]
                    p = pos_ref[base + r]
                    # In-VMEM row gathers, written straight into the output
                    # blocks (no scratch copy-through).
                    x_ref[pl.ds(r, 1), :] = tok_ref[pl.ds(t, 1), :]
                    e_ref[pl.ds(r, 1), :] = etab_ref[pl.ds(p, 1), :]

                if guard:
                    # Skip the padded tail rows of the last tile.
                    pl.when(base + r < n_valid)(gather_row)
                else:
                    gather_row()

    return kernel


def _make_hbm_gather_kernel(tm, unroll):
    """Large-vocab fallback: tables stay in HBM, per-row DMA gather.

    DMAs land directly in the pipelined output blocks and are drained with a
    single wait per semaphore (DMA semaphores are byte-counted; the tm issued
    (1, D) row copies per output sum to exactly one (tm, D) descriptor).
    Padded tail rows gather valid rows (id 0 / mod-only row) so the byte totals
    stay exact; the caller slices them off.
    """
    # TODO(synk): coalesce the positional gather into one contiguous DMA per
    # sequence run (pos ids of valid tokens are consecutive) instead of per-row
    # copies; kept per-row here to support arbitrary masks in the fallback.

    def kernel(ids_ref, pos_ref,          # scalar prefetch (SMEM)
               tok_hbm, etab_hbm,         # HBM tables (pl.ANY)
               x_ref, e_ref,              # (tm, D) pipelined output blocks
               sems):                     # DMA semaphores, shape (2,)
        base = pl.program_id(0) * tm

        @pl.loop(0, tm // unroll)
        def _issue(c):
            for j in range(unroll):
                r = c * unroll + j
                t = ids_ref[base + r]
                p = pos_ref[base + r]
                pltpu.make_async_copy(tok_hbm.at[pl.ds(t, 1)],
                                      x_ref.at[pl.ds(r, 1)], sems.at[0]).start()
                pltpu.make_async_copy(etab_hbm.at[pl.ds(p, 1)],
                                      e_ref.at[pl.ds(r, 1)], sems.at[1]).start()

        # One wait per semaphore, sized to the whole (tm, D) output block.
        pltpu.make_async_copy(x_ref, x_ref, sems.at[0]).wait()
        pltpu.make_async_copy(e_ref, e_ref, sems.at[1]).wait()

    return kernel


# --------------------------------------------------------------------------- #
# One-time parameter prep (call once at init, NOT per forward call)
# --------------------------------------------------------------------------- #
def prepare_tables(tok_table, pos_emb, mod_emb):
    """Fold mod_emb into the positional table and cast everything to f32.

    emb_table[p]  = pos_emb[p] + mod_emb   for p < max_length   (valid tokens)
    emb_table[ML] = mod_emb                                      (masked tokens)
    """
    mod = jnp.asarray(mod_emb, jnp.float32).reshape(1, -1)
    pos = jnp.asarray(pos_emb, jnp.float32)
    emb_table = jnp.concatenate([pos + mod, mod], axis=0)        # (ML+1, D)
    return jnp.asarray(tok_table, jnp.float32), emb_table


# --------------------------------------------------------------------------- #
# Forward wrapper
# --------------------------------------------------------------------------- #
def _round_up(x, m):
    return ((x + m - 1) // m) * m


def sequence_encoder_embedding(ids, input_mask, tok_table, emb_table, *,
                               tm=256, unroll=8,
                               vmem_table_budget_bytes=16 << 20):
    """ids, input_mask: (B, L) int.  Returns (x, emb), both (B, L, D) float32.

    tok_table: (V, D) f32 token-embedding table (padding_idx row pre-zeroed).
    emb_table: (ML+1, D) f32 from prepare_tables() (pos+mod rows, last row mod-only).
    """
    B, L = ids.shape
    V, D = tok_table.shape
    ML = emb_table.shape[0] - 1

    # ---- tiny per-call XLA prep ---------------------------------------------
    # Positional ids: cumsum(valid) - 1; masked positions route to the mod-only
    # row ML (so the single gather gives pos+mod for valid, mod for masked).
    mask_i = input_mask.astype(jnp.int32)
    pos_id = jnp.cumsum(1 - mask_i, axis=1) - 1
    pos_id = jnp.where(mask_i == 1, ML, pos_id)

    # Defensive clamps (nn.Embedding / torch.gather would error on OOB ids;
    # here out-of-range indices are clamped instead).
    flat_ids = jnp.clip(ids.astype(jnp.int32).reshape(-1), 0, V - 1)
    flat_pos = jnp.clip(pos_id.reshape(-1), 0, ML)

    n = B * L
    tm = max(8, min(tm, _round_up(n, 8)))
    tm = _round_up(tm, 8)
    unroll = max(1, math.gcd(tm, unroll))
    n_pad = _round_up(n, tm)
    if n_pad != n:
        flat_ids = jnp.pad(flat_ids, (0, n_pad - n))                       # -> row 0
        flat_pos = jnp.pad(flat_pos, (0, n_pad - n), constant_values=ML)   # -> mod row
    grid = (n_pad // tm,)

    # ---- choose path: VMEM-resident tables vs. HBM row-gather fallback ------
    table_bytes = 2 * (V + ML + 1) * D * 4          # pipeline may double-buffer
    out_buf_bytes = 2 * 2 * tm * D * 4              # 2 outputs, double-buffered
    use_vmem_tables = table_bytes <= vmem_table_budget_bytes

    if use_vmem_tables:
        kernel = _make_vmem_gather_kernel(n, tm, unroll, guard=(n_pad != n))
        in_specs = [
            pl.BlockSpec((V, D), lambda i, ids_sm, pos_sm: (0, 0)),        # resident
            pl.BlockSpec((ML + 1, D), lambda i, ids_sm, pos_sm: (0, 0)),   # resident
        ]
        scratch_shapes = []
        vmem_needed = table_bytes + out_buf_bytes
    else:
        kernel = _make_hbm_gather_kernel(tm, unroll)
        in_specs = [
            pl.BlockSpec(memory_space=pl.ANY),      # token table stays in HBM
            pl.BlockSpec(memory_space=pl.ANY),      # pos+mod table stays in HBM
        ]
        scratch_shapes = [pltpu.SemaphoreType.DMA((2,))]
        vmem_needed = out_buf_bytes

    out_specs = [
        pl.BlockSpec((tm, D), lambda i, ids_sm, pos_sm: (i, 0)),
        pl.BlockSpec((tm, D), lambda i, ids_sm, pos_sm: (i, 0)),
    ]

    grid_spec = pltpu.PrefetchScalarGridSpec(
        num_scalar_prefetch=2,                       # flat_ids, flat_pos -> SMEM
        grid=grid,
        in_specs=in_specs,
        out_specs=out_specs,
        scratch_shapes=scratch_shapes,
    )

    vmem_limit = int(min(64 << 20, max(32 << 20, vmem_needed + (8 << 20))))

    x_flat, e_flat = pl.pallas_call(
        kernel,
        out_shape=(
            jax.ShapeDtypeStruct((n_pad, D), tok_table.dtype),
            jax.ShapeDtypeStruct((n_pad, D), emb_table.dtype),
        ),
        grid_spec=grid_spec,
        compiler_params=pltpu.CompilerParams(
            dimension_semantics=("parallel",),       # token tiles are independent
            vmem_limit_bytes=vmem_limit,
        ),
    )(flat_ids, flat_pos, tok_table, emb_table)

    if n_pad != n:
        x_flat = x_flat[:n]
        e_flat = e_flat[:n]
    return x_flat.reshape(B, L, D), e_flat.reshape(B, L, D)


# --------------------------------------------------------------------------- #
# Pure-JAX reference (mirrors the PyTorch forward)
# --------------------------------------------------------------------------- #
def build_1d_sincos_posemb(max_len, embed_dim, temperature=10000.0):
    assert embed_dim % 2 == 0
    pos = jnp.arange(max_len, dtype=jnp.float32)
    pos_dim = embed_dim // 2
    omega = jnp.arange(pos_dim, dtype=jnp.float32) / pos_dim
    omega = 1.0 / (temperature ** omega)
    out = jnp.einsum("n,d->nd", pos, omega)
    return jnp.concatenate([jnp.sin(out), jnp.cos(out)], axis=1)   # (max_len, D)


def reference(ids, mask, tok_table, pos_emb, mod_emb):
    x = tok_table[ids]                                             # (B, L, D)
    valid = (1 - mask).astype(jnp.int32)
    pos_id = jnp.cumsum(valid, axis=1) - 1
    pos_id = jnp.where(mask == 1, 0, pos_id)
    pos_g = pos_emb[pos_id]                                        # (B, L, D)
    pos_g = jnp.where((mask == 1)[..., None], 0.0, pos_g)
    emb = pos_g + mod_emb[None]                                    # mod_emb (1, D)
    return x, emb


def _run_case(key, B, L, vocab_size, max_length, dim_tokens, mask_fn, tm):
    padding_idx = 0
    k_ids, k_tok, k_mod = jax.random.split(key, 3)

    ids = jax.random.randint(k_ids, (B, L), 0, vocab_size, dtype=jnp.int32)
    input_mask = mask_fn(jnp.zeros((B, L), dtype=jnp.int32))

    tok_table = jax.random.normal(k_tok, (vocab_size, dim_tokens), dtype=jnp.float32)
    tok_table = tok_table.at[padding_idx].set(0.0)        # nn.Embedding padding_idx row
    pos_emb = build_1d_sincos_posemb(max_length, dim_tokens).astype(jnp.float32)
    mod_emb = 0.02 * jax.random.normal(k_mod, (1, dim_tokens), dtype=jnp.float32)

    # One-time parameter prep (hoisted out of the per-call path).
    tok_prep, emb_table = prepare_tables(tok_table, pos_emb, mod_emb)

    x, emb = sequence_encoder_embedding(ids, input_mask, tok_prep, emb_table, tm=tm)
    jax.block_until_ready((x, emb))

    x_ref, emb_ref = reference(ids, input_mask, tok_table, pos_emb, mod_emb)
    assert jnp.allclose(x, x_ref, atol=1e-6, rtol=1e-6), "token embedding mismatch"
    assert jnp.allclose(emb, emb_ref, atol=1e-6, rtol=1e-6), "pos/mod embedding mismatch"


if __name__ == "__main__":
    key = jax.random.PRNGKey(0)
    k1, k2 = jax.random.split(key)

    # Case 1: small, module-consistent shapes (B=2, L=8, V=64, ML=16, D=32),
    # trailing padding mask on batch 1.
    _run_case(k1, B=2, L=8, vocab_size=64, max_length=16, dim_tokens=32,
              mask_fn=lambda m: m.at[1, 5:].set(1), tm=256)

    # Case 2: lane-dense D=128, multi-tile grid with a padded tail (n=80, tm=32
    # -> 3 grid steps, last one partially masked off), masks both in the middle
    # and at the end.
    _run_case(k2, B=2, L=40, vocab_size=200, max_length=64, dim_tokens=128,
              mask_fn=lambda m: m.at[0, 10:13].set(1).at[1, 25:].set(1), tm=32)

    print("KERNEL_OK")
</pallas_src>

<mosaic_0001>
module attributes {stable_mosaic.version = 11 : i64} {
  func.func @kernel(%arg0: i32, %arg1: memref<16xi32, #tpu.memory_space<smem>>, %arg2: memref<16xi32, #tpu.memory_space<smem>>, %arg3: memref<64x32xf32, #tpu.memory_space<vmem>>, %arg4: memref<17x32xf32, #tpu.memory_space<vmem>>, %arg5: memref<16x32xf32, #tpu.memory_space<vmem>>, %arg6: memref<16x32xf32, #tpu.memory_space<vmem>>) attributes {dimension_semantics = [#tpu.dimension_semantics<parallel>], iteration_bounds = array<i64: 1>, scalar_prefetch = 2 : i64, scratch_operands = 0 : i64, tpu.core_type = #tpu.core_type<tc>, window_params = [{pipeline_mode = #tpu.pipeline_mode<synchronous>, transform_indices = @transform_0, window_bounds = array<i64: 64, 32>}, {pipeline_mode = #tpu.pipeline_mode<synchronous>, transform_indices = @transform_1, window_bounds = array<i64: 17, 32>}, {transform_indices = @transform_2, window_bounds = array<i64: 16, 32>}, {transform_indices = @transform_3, window_bounds = array<i64: 16, 32>}]} {
    %c16_i32 = arith.constant 16 : i32
    %0 = arith.muli %arg0, %c16_i32 : i32
    %c0_i32 = arith.constant 0 : i32
    %c2_i32 = arith.constant 2 : i32
    %1 = arith.addi %c0_i32, %c2_i32 : i32
    %c1_i32 = arith.constant 1 : i32
    scf.for %arg7 = %c0_i32 to %1 step %c1_i32  : i32 {
      %c1_i32_1 = arith.constant 1 : i32
      %2 = arith.muli %arg7, %c1_i32_1 : i32
      %c0_i32_2 = arith.constant 0 : i32
      %3 = arith.addi %c0_i32_2, %2 : i32
      %c8_i32 = arith.constant 8 : i32
      %4 = arith.muli %3, %c8_i32 : i32
      %c0_i32_3 = arith.constant 0 : i32
      %5 = arith.addi %4, %c0_i32_3 : i32
      %6 = arith.addi %0, %5 : i32
      %7 = arith.index_cast %6 : i32 to index
      %8 = memref.load %arg1[%7] : memref<16xi32, #tpu.memory_space<smem>>
      %9 = arith.addi %0, %5 : i32
      %10 = arith.index_cast %9 : i32 to index
      %11 = memref.load %arg2[%10] : memref<16xi32, #tpu.memory_space<smem>>
      %12 = arith.index_cast %8 : i32 to index
      %c0 = arith.constant 0 : index
      %13 = vector.load %arg3[%12, %c0] : memref<64x32xf32, #tpu.memory_space<vmem>>, vector<1x32xf32>
      %14 = arith.index_cast %5 : i32 to index
      %c0_4 = arith.constant 0 : index
      %15 = vector.load %arg5[%14, %c0_4] : memref<16x32xf32, #tpu.memory_space<vmem>>, vector<1x32xf32>
      tpu.vector_store %arg5[%14, %c0_4], %13 {strides = array<i32>} : memref<16x32xf32, #tpu.memory_space<vmem>>, vector<1x32xf32>,
      %16 = arith.index_cast %11 : i32 to index
      %c0_5 = arith.constant 0 : index
      %17 = vector.load %arg4[%16, %c0_5] : memref<17x32xf32, #tpu.memory_space<vmem>>, vector<1x32xf32>
      %18 = arith.index_cast %5 : i32 to index
      %c0_6 = arith.constant 0 : index
      %19 = vector.load %arg6[%18, %c0_6] : memref<16x32xf32, #tpu.memory_space<vmem>>, vector<1x32xf32>
      tpu.vector_store %arg6[%18, %c0_6], %17 {strides = array<i32>} : memref<16x32xf32, #tpu.memory_space<vmem>>, vector<1x32xf32>,
      %c8_i32_7 = arith.constant 8 : i32
      %20 = arith.muli %3, %c8_i32_7 : i32
      %c1_i32_8 = arith.constant 1 : i32
      %21 = arith.addi %20, %c1_i32_8 : i32
      %22 = arith.addi %0, %21 : i32
      %23 = arith.index_cast %22 : i32 to index
      %24 = memref.load %arg1[%23] : memref<16xi32, #tpu.memory_space<smem>>
      %25 = arith.addi %0, %21 : i32
      %26 = arith.index_cast %25 : i32 to index
      %27 = memref.load %arg2[%26] : memref<16xi32, #tpu.memory_space<smem>>
      %28 = arith.index_cast %24 : i32 to index
      %c0_9 = arith.constant 0 : index
      %29 = vector.load %arg3[%28, %c0_9] : memref<64x32xf32, #tpu.memory_space<vmem>>, vector<1x32xf32>
      %30 = arith.index_cast %21 : i32 to index
      %c0_10 = arith.constant 0 : index
      %31 = vector.load %arg5[%30, %c0_10] : memref<16x32xf32, #tpu.memory_space<vmem>>, vector<1x32xf32>
      tpu.vector_store %arg5[%30, %c0_10], %29 {strides = array<i32>} : memref<16x32xf32, #tpu.memory_space<vmem>>, vector<1x32xf32>,
      %32 = arith.index_cast %27 : i32 to index
      %c0_11 = arith.constant 0 : index
      %33 = vector.load %arg4[%32, %c0_11] : memref<17x32xf32, #tpu.memory_space<vmem>>, vector<1x32xf32>
      %34 = arith.index_cast %21 : i32 to index
      %c0_12 = arith.constant 0 : index
      %35 = vector.load %arg6[%34, %c0_12] : memref<16x32xf32, #tpu.memory_space<vmem>>, vector<1x32xf32>
      tpu.vector_store %arg6[%34, %c0_12], %33 {strides = array<i32>} : memref<16x32xf32, #tpu.memory_space<vmem>>, vector<1x32xf32>,
      %c8_i32_13 = arith.constant 8 : i32
      %36 = arith.muli %3, %c8_i32_13 : i32
      %c2_i32_14 = arith.constant 2 : i32
      %37 = arith.addi %36, %c2_i32_14 : i32
      %38 = arith.addi %0, %37 : i32
      %39 = arith.index_cast %38 : i32 to index
      %40 = memref.load %arg1[%39] : memref<16xi32, #tpu.memory_space<smem>>
      %41 = arith.addi %0, %37 : i32
      %42 = arith.index_cast %41 : i32 to index
      %43 = memref.load %arg2[%42] : memref<16xi32, #tpu.memory_space<smem>>
      %44 = arith.index_cast %40 : i32 to index
      %c0_15 = arith.constant 0 : index
      %45 = vector.load %arg3[%44, %c0_15] : memref<64x32xf32, #tpu.memory_space<vmem>>, vector<1x32xf32>
      %46 = arith.index_cast %37 : i32 to index
      %c0_16 = arith.constant 0 : index
      %47 = vector.load %arg5[%46, %c0_16] : memref<16x32xf32, #tpu.memory_space<vmem>>, vector<1x32xf32>
      tpu.vector_store %arg5[%46, %c0_16], %45 {strides = array<i32>} : memref<16x32xf32, #tpu.memory_space<vmem>>, vector<1x32xf32>,
      %48 = arith.index_cast %43 : i32 to index
      %c0_17 = arith.constant 0 : index
      %49 = vector.load %arg4[%48, %c0_17] : memref<17x32xf32, #tpu.memory_space<vmem>>, vector<1x32xf32>
      %50 = arith.index_cast %37 : i32 to index
      %c0_18 = arith.constant 0 : index
      %51 = vector.load %arg6[%50, %c0_18] : memref<16x32xf32, #tpu.memory_space<vmem>>, vector<1x32xf32>
      tpu.vector_store %arg6[%50, %c0_18], %49 {strides = array<i32>} : memref<16x32xf32, #tpu.memory_space<vmem>>, vector<1x32xf32>,
      %c8_i32_19 = arith.constant 8 : i32
      %52 = arith.muli %3, %c8_i32_19 : i32
      %c3_i32 = arith.constant 3 : i32
      %53 = arith.addi %52, %c3_i32 : i32
      %54 = arith.addi %0, %53 : i32
      %55 = arith.index_cast %54 : i32 to index
      %56 = memref.load %arg1[%55] : memref<16xi32, #tpu.memory_space<smem>>
      %57 = arith.addi %0, %53 : i32
      %58 = arith.index_cast %57 : i32 to index
      %59 = memref.load %arg2[%58] : memref<16xi32, #tpu.memory_space<smem>>
      %60 = arith.index_cast %56 : i32 to index
      %c0_20 = arith.constant 0 : index
      %61 = vector.load %arg3[%60, %c0_20] : memref<64x32xf32, #tpu.memory_space<vmem>>, vector<1x32xf32>
      %62 = arith.index_cast %53 : i32 to index
      %c0_21 = arith.constant 0 : index
      %63 = vector.load %arg5[%62, %c0_21] : memref<16x32xf32, #tpu.memory_space<vmem>>, vector<1x32xf32>
      tpu.vector_store %arg5[%62, %c0_21], %61 {strides = array<i32>} : memref<16x32xf32, #tpu.memory_space<vmem>>, vector<1x32xf32>,
      %64 = arith.index_cast %59 : i32 to index
      %c0_22 = arith.constant 0 : index
      %65 = vector.load %arg4[%64, %c0_22] : memref<17x32xf32, #tpu.memory_space<vmem>>, vector<1x32xf32>
      %66 = arith.index_cast %53 : i32 to index
      %c0_23 = arith.constant 0 : index
      %67 = vector.load %arg6[%66, %c0_23] : memref<16x32xf32, #tpu.memory_space<vmem>>, vector<1x32xf32>
      tpu.vector_store %arg6[%66, %c0_23], %65 {strides = array<i32>} : memref<16x32xf32, #tpu.memory_space<vmem>>, vector<1x32xf32>,
      %c8_i32_24 = arith.constant 8 : i32
      %68 = arith.muli %3, %c8_i32_24 : i32
      %c4_i32 = arith.constant 4 : i32
      %69 = arith.addi %68, %c4_i32 : i32
      %70 = arith.addi %0, %69 : i32
      %71 = arith.index_cast %70 : i32 to index
      %72 = memref.load %arg1[%71] : memref<16xi32, #tpu.memory_space<smem>>
      %73 = arith.addi %0, %69 : i32
      %74 = arith.index_cast %73 : i32 to index
      %75 = memref.load %arg2[%74] : memref<16xi32, #tpu.memory_space<smem>>
      %76 = arith.index_cast %72 : i32 to index
      %c0_25 = arith.constant 0 : index
      %77 = vector.load %arg3[%76, %c0_25] : memref<64x32xf32, #tpu.memory_space<vmem>>, vector<1x32xf32>
      %78 = arith.index_cast %69 : i32 to index
      %c0_26 = arith.constant 0 : index
      %79 = vector.load %arg5[%78, %c0_26] : memref<16x32xf32, #tpu.memory_space<vmem>>, vector<1x32xf32>
      tpu.vector_store %arg5[%78, %c0_26], %77 {strides = array<i32>} : memref<16x32xf32, #tpu.memory_space<vmem>>, vector<1x32xf32>,
      %80 = arith.index_cast %75 : i32 to index
      %c0_27 = arith.constant 0 : index
      %81 = vector.load %arg4[%80, %c0_27] : memref<17x32xf32, #tpu.memory_space<vmem>>, vector<1x32xf32>
      %82 = arith.index_cast %69 : i32 to index
      %c0_28 = arith.constant 0 : index
      %83 = vector.load %arg6[%82, %c0_28] : memref<16x32xf32, #tpu.memory_space<vmem>>, vector<1x32xf32>
      tpu.vector_store %arg6[%82, %c0_28], %81 {strides = array<i32>} : memref<16x32xf32, #tpu.memory_space<vmem>>, vector<1x32xf32>,
      %c8_i32_29 = arith.constant 8 : i32
      %84 = arith.muli %3, %c8_i32_29 : i32
      %c5_i32 = arith.constant 5 : i32
      %85 = arith.addi %84, %c5_i32 : i32
      %86 = arith.addi %0, %85 : i32
      %87 = arith.index_cast %86 : i32 to index
      %88 = memref.load %arg1[%87] : memref<16xi32, #tpu.memory_space<smem>>
      %89 = arith.addi %0, %85 : i32
      %90 = arith.index_cast %89 : i32 to index
      %91 = memref.load %arg2[%90] : memref<16xi32, #tpu.memory_space<smem>>
      %92 = arith.index_cast %88 : i32 to index
      %c0_30 = arith.constant 0 : index
      %93 = vector.load %arg3[%92, %c0_30] : memref<64x32xf32, #tpu.memory_space<vmem>>, vector<1x32xf32>
      %94 = arith.index_cast %85 : i32 to index
      %c0_31 = arith.constant 0 : index
      %95 = vector.load %arg5[%94, %c0_31] : memref<16x32xf32, #tpu.memory_space<vmem>>, vector<1x32xf32>
      tpu.vector_store %arg5[%94, %c0_31], %93 {strides = array<i32>} : memref<16x32xf32, #tpu.memory_space<vmem>>, vector<1x32xf32>,
      %96 = arith.index_cast %91 : i32 to index
      %c0_32 = arith.constant 0 : index
      %97 = vector.load %arg4[%96, %c0_32] : memref<17x32xf32, #tpu.memory_space<vmem>>, vector<1x32xf32>
      %98 = arith.index_cast %85 : i32 to index
      %c0_33 = arith.constant 0 : index
      %99 = vector.load %arg6[%98, %c0_33] : memref<16x32xf32, #tpu.memory_space<vmem>>, vector<1x32xf32>
      tpu.vector_store %arg6[%98, %c0_33], %97 {strides = array<i32>} : memref<16x32xf32, #tpu.memory_space<vmem>>, vector<1x32xf32>,
      %c8_i32_34 = arith.constant 8 : i32
      %100 = arith.muli %3, %c8_i32_34 : i32
      %c6_i32 = arith.constant 6 : i32
      %101 = arith.addi %100, %c6_i32 : i32
      %102 = arith.addi %0, %101 : i32
      %103 = arith.index_cast %102 : i32 to index
      %104 = memref.load %arg1[%103] : memref<16xi32, #tpu.memory_space<smem>>
      %105 = arith.addi %0, %101 : i32
      %106 = arith.index_cast %105 : i32 to index
      %107 = memref.load %arg2[%106] : memref<16xi32, #tpu.memory_space<smem>>
      %108 = arith.index_cast %104 : i32 to index
      %c0_35 = arith.constant 0 : index
      %109 = vector.load %arg3[%108, %c0_35] : memref<64x32xf32, #tpu.memory_space<vmem>>, vector<1x32xf32>
      %110 = arith.index_cast %101 : i32 to index
      %c0_36 = arith.constant 0 : index
      %111 = vector.load %arg5[%110, %c0_36] : memref<16x32xf32, #tpu.memory_space<vmem>>, vector<1x32xf32>
      tpu.vector_store %arg5[%110, %c0_36], %109 {strides = array<i32>} : memref<16x32xf32, #tpu.memory_space<vmem>>, vector<1x32xf32>,
      %112 = arith.index_cast %107 : i32 to index
      %c0_37 = arith.constant 0 : index
      %113 = vector.load %arg4[%112, %c0_37] : memref<17x32xf32, #tpu.memory_space<vmem>>, vector<1x32xf32>
      %114 = arith.index_cast %101 : i32 to index
      %c0_38 = arith.constant 0 : index
      %115 = vector.load %arg6[%114, %c0_38] : memref<16x32xf32, #tpu.memory_space<vmem>>, vector<1x32xf32>
      tpu.vector_store %arg6[%114, %c0_38], %113 {strides = array<i32>} : memref<16x32xf32, #tpu.memory_space<vmem>>, vector<1x32xf32>,
      %c8_i32_39 = arith.constant 8 : i32
      %116 = arith.muli %3, %c8_i32_39 : i32
      %c7_i32 = arith.constant 7 : i32
      %117 = arith.addi %116, %c7_i32 : i32
      %118 = arith.addi %0, %117 : i32
      %119 = arith.index_cast %118 : i32 to index
      %120 = memref.load %arg1[%119] : memref<16xi32, #tpu.memory_space<smem>>
      %121 = arith.addi %0, %117 : i32
      %122 = arith.index_cast %121 : i32 to index
      %123 = memref.load %arg2[%122] : memref<16xi32, #tpu.memory_space<smem>>
      %124 = arith.index_cast %120 : i32 to index
      %c0_40 = arith.constant 0 : index
      %125 = vector.load %arg3[%124, %c0_40] : memref<64x32xf32, #tpu.memory_space<vmem>>, vector<1x32xf32>
      %126 = arith.index_cast %117 : i32 to index
      %c0_41 = arith.constant 0 : index
      %127 = vector.load %arg5[%126, %c0_41] : memref<16x32xf32, #tpu.memory_space<vmem>>, vector<1x32xf32>
      tpu.vector_store %arg5[%126, %c0_41], %125 {strides = array<i32>} : memref<16x32xf32, #tpu.memory_space<vmem>>, vector<1x32xf32>,
      %128 = arith.index_cast %123 : i32 to index
      %c0_42 = arith.constant 0 : index
      %129 = vector.load %arg4[%128, %c0_42] : memref<17x32xf32, #tpu.memory_space<vmem>>, vector<1x32xf32>
      %130 = arith.index_cast %117 : i32 to index
      %c0_43 = arith.constant 0 : index
      %131 = vector.load %arg6[%130, %c0_43] : memref<16x32xf32, #tpu.memory_space<vmem>>, vector<1x32xf32>
      tpu.vector_store %arg6[%130, %c0_43], %129 {strides = array<i32>} : memref<16x32xf32, #tpu.memory_space<vmem>>, vector<1x32xf32>,
    }
    %c2_i32_0 = arith.constant 2 : i32
    return
  }
  func.func @transform_0(%arg0: i32, %arg1: memref<16xi32, #tpu.memory_space<smem>>, %arg2: memref<16xi32, #tpu.memory_space<smem>>) -> (i32, i32) {
    %c0_i32 = arith.constant 0 : i32
    %c0_i32_0 = arith.constant 0 : i32
    %c0_i32_1 = arith.constant 0 : i32
    return %c0_i32, %c0_i32_0 : i32, i32
  }
  func.func @transform_1(%arg0: i32, %arg1: memref<16xi32, #tpu.memory_space<smem>>, %arg2: memref<16xi32, #tpu.memory_space<smem>>) -> (i32, i32) {
    %c0_i32 = arith.constant 0 : i32
    %c0_i32_0 = arith.constant 0 : i32
    %c0_i32_1 = arith.constant 0 : i32
    return %c0_i32, %c0_i32_0 : i32, i32
  }
  func.func @transform_2(%arg0: i32, %arg1: memref<16xi32, #tpu.memory_space<smem>>, %arg2: memref<16xi32, #tpu.memory_space<smem>>) -> (i32, i32) {
    %c0_i32 = arith.constant 0 : i32
    %c0_i32_0 = arith.constant 0 : i32
    return %arg0, %c0_i32 : i32, i32
  }
  func.func @transform_3(%arg0: i32, %arg1: memref<16xi32, #tpu.memory_space<smem>>, %arg2: memref<16xi32, #tpu.memory_space<smem>>) -> (i32, i32) {
    %c0_i32 = arith.constant 0 : i32
    %c0_i32_0 = arith.constant 0 : i32
    return %arg0, %c0_i32 : i32, i32
  }
}

</mosaic_0001>

<llo_original>
// kernel: tpu_custom_call.1
$region0: #{tpu_custom_call.1}
  #allocation0 [shape = 'u32[]', space=smem, size = 0x4, offset = 0x4, fixed_abs, tag = 'smem constant byte address 0x4 - core index']
  #allocation1 [shape = 'u32[72,128]{1,0:T(1,128)}', space=vmem, size = 0x9000, scoped, tag = 'internal scratch']
  #allocation2 [shape = 's32[1]{0}', space=sflag, size = 0x4, scoped, tag = 'scoped memory for tpu_custom_call.1']
  #allocation3 [shape = 'u8[512]{0}', space=smem, size = 0x200, scoped, tag = 'prefetched SMEM operand 0']
  #allocation4 [shape = 'u8[512]{0}', space=smem, size = 0x200, scoped, tag = 'prefetched SMEM operand 1']
  %s0 = inlined_call_operand.vmem [shape: s32[16], index: 0, kind: input, shape index: {}]
  %s1 = inlined_call_operand.vmem [shape: s32[16], index: 1, kind: input, shape index: {}]
  %s2 = inlined_call_operand.vmem [shape: f32[64,32], index: 2, kind: input, shape index: {}]
  %s3 = inlined_call_operand.vmem [shape: f32[17,32], index: 3, kind: input, shape index: {}]
  %s4 = inlined_call_operand.hbm [shape: f32[16,32], index: 4, kind: output, shape index: {0}]
  %s5 = inlined_call_operand.hbm [shape: f32[16,32], index: 5, kind: output, shape index: {1}]
  %6 = xla_tuple %s4, %s5
  %s7 = sld [smem:[#allocation0]]
  $region33: #{tpu_custom_call.1} parent=0
    _
  %s9 = ssub.s32 1, %s7
  %s10 = scalar_select 0, %s9, %s7
  %s12 = sshll.u32 %s0, 4
  %s13 = int_to_ptr.vmem [resolvable:$true] %s12
  %15 = dma.vmem_to_smem %s13, 16, [#allocation3], [#allocation2]
  %s17 = sshll.u32 %s1, 4
  %s18 = int_to_ptr.vmem [resolvable:$true] %s17
  %20 = dma.vmem_to_smem %s18, 16, [#allocation4], [#allocation2]
  %22 = dma.done [#allocation2], 32
  %23 = sfence
  $region1: #{tpu_custom_call.1} parent=0
    #allocation5 [shape = 'u8[8192]{0}', space=vmem, size = 0x2000, scoped, tag = 'output window, operand 0, single buffered']
    #allocation6 [shape = 's32[1]{0}', space=sflag, size = 0x4, scoped, tag = 'scoped memory for tpu_custom_call.1']
    #allocation7 [shape = 'u8[8192]{0}', space=vmem, size = 0x2000, scoped, tag = 'output window, operand 1, single buffered']
    #allocation8 [shape = 's32[1]{0}', space=sflag, size = 0x4, scoped, tag = 'scoped memory for tpu_custom_call.1']
    %24 = vsyncpa [#allocation6], 0
    %25 = vsyncpa [#allocation8], 0
    // Predicated region
    $region2: #{tpu_custom_call.1} parent=1 // pred_check
      _
    $region3: #{tpu_custom_call.1} parent=1 // pred_check_branch
      %27 = sbr.rel (0) target = $region5
    $region4: #{tpu_custom_call.1} parent=1 // pred_region
      _
    $region5: #{tpu_custom_call.1} parent=1 // pred_fallthru
      _
    // Predicated region
    $region6: #{tpu_custom_call.1} parent=1 // pred_check
      _
    $region7: #{tpu_custom_call.1} parent=1 // pred_check_branch
      %29 = sbr.rel (0) target = $region9
    $region8: #{tpu_custom_call.1} parent=1 // pred_region
      _
    $region9: #{tpu_custom_call.1} parent=1 // pred_fallthru
      _
    %s30 = smul.u32 0, 16
    loop: start=0, step=1, limit=2
    $region10: #{tpu_custom_call.1} parent=1 // loop_pre_header
      _
    $region11: #{tpu_custom_call.1} parent=1 // loop_header
      %s32 = sphi 0, %s36
      %p33 = scmp.ge.s32.totalorder %s32, 2
    $region12: #{tpu_custom_call.1} parent=1 // loop_header_branch
      %35 = sbr.rel (%p33) target = $region16
    $region13: #{tpu_custom_call.1} parent=1 // loop_body
      %s37 = smul.u32 %s32, 8
      %s38 = sadd.s32 %s30, %s37
      %s39 = sld [smem:[#allocation3 + %s38]]
      %s40 = sld [smem:[#allocation4 + %s38]]
      %s41 = scalar_lea.vmem %s2, %s39
      %v42 = vld [vmem:[%s41] sm:$0x1]
      %s43 = scalar_lea.vmem [#allocation5], %s37
      %vm44 = vcmask 253952
      %45 = vst.msk [vmem:[%s43] sm:$0x1] %vm44, %v42
      %s46 = scalar_lea.vmem %s3, %s40
      %v47 = vld [vmem:[%s46] sm:$0x1]
      %s48 = scalar_lea.vmem [#allocation7], %s37
      %49 = vst.msk [vmem:[%s48] sm:$0x1] %vm44, %v47
      %s50 = sadd.s32 %s37, 1
      %s51 = sadd.s32 %s30, %s50
      %s52 = sld [smem:[#allocation3 + %s51]]
      %s53 = sld [smem:[#allocation4 + %s51]]
      %s54 = scalar_lea.vmem %s2, %s52
      %v55 = vld [vmem:[%s54] sm:$0x1]
      %s56 = scalar_lea.vmem [#allocation5], %s50
      %57 = vst.msk [vmem:[%s56] sm:$0x1] %vm44, %v55
      %s58 = scalar_lea.vmem %s3, %s53
      %v59 = vld [vmem:[%s58] sm:$0x1]
      %s60 = scalar_lea.vmem [#allocation7], %s50
      %61 = vst.msk [vmem:[%s60] sm:$0x1] %vm44, %v59
      %s62 = sadd.s32 %s37, 2
      %s63 = sadd.s32 %s30, %s62
      %s64 = sld [smem:[#allocation3 + %s63]]
      %s65 = sld [smem:[#allocation4 + %s63]]
      %s66 = scalar_lea.vmem %s2, %s64
      %v67 = vld [vmem:[%s66] sm:$0x1]
      %s68 = scalar_lea.vmem [#allocation5], %s62
      %69 = vst.msk [vmem:[%s68] sm:$0x1] %vm44, %v67
      %s70 = scalar_lea.vmem %s3, %s65
      %v71 = vld [vmem:[%s70] sm:$0x1]
      %s72 = scalar_lea.vmem [#allocation7], %s62
      %73 = vst.msk [vmem:[%s72] sm:$0x1] %vm44, %v71
      %s74 = sadd.s32 %s37, 3
      %s75 = sadd.s32 %s30, %s74
      %s76 = sld [smem:[#allocation3 + %s75]]
      %s77 = sld [smem:[#allocation4 + %s75]]
      %s78 = scalar_lea.vmem %s2, %s76
      %v79 = vld [vmem:[%s78] sm:$0x1]
      %s80 = scalar_lea.vmem [#allocation5], %s74
      %81 = vst.msk [vmem:[%s80] sm:$0x1] %vm44, %v79
      %s82 = scalar_lea.vmem %s3, %s77
      %v83 = vld [vmem:[%s82] sm:$0x1]
      %s84 = scalar_lea.vmem [#allocation7], %s74
      %85 = vst.msk [vmem:[%s84] sm:$0x1] %vm44, %v83
      %s86 = sadd.s32 %s37, 4
      %s87 = sadd.s32 %s30, %s86
      %s88 = sld [smem:[#allocation3 + %s87]]
      %s89 = sld [smem:[#allocation4 + %s87]]
      %s90 = scalar_lea.vmem %s2, %s88
      %v91 = vld [vmem:[%s90] sm:$0x1]
      %s92 = scalar_lea.vmem [#allocation5], %s86
      %93 = vst.msk [vmem:[%s92] sm:$0x1] %vm44, %v91
      %s94 = scalar_lea.vmem %s3, %s89
      %v95 = vld [vmem:[%s94] sm:$0x1]
      %s96 = scalar_lea.vmem [#allocation7], %s86
      %97 = vst.msk [vmem:[%s96] sm:$0x1] %vm44, %v95
      %s98 = sadd.s32 %s37, 5
      %s99 = sadd.s32 %s30, %s98
      %s100 = sld [smem:[#allocation3 + %s99]]
      %s101 = sld [smem:[#allocation4 + %s99]]
      %s102 = scalar_lea.vmem %s2, %s100
      %v103 = vld [vmem:[%s102] sm:$0x1]
      %s104 = scalar_lea.vmem [#allocation5], %s98
      %105 = vst.msk [vmem:[%s104] sm:$0x1] %vm44, %v103
      %s106 = scalar_lea.vmem %s3, %s101
      %v107 = vld [vmem:[%s106] sm:$0x1]
      %s108 = scalar_lea.vmem [#allocation7], %s98
      %109 = vst.msk [vmem:[%s108] sm:$0x1] %vm44, %v107
      %s110 = sadd.s32 %s37, 6
      %s111 = sadd.s32 %s30, %s110
      %s112 = sld [smem:[#allocation3 + %s111]]
      %s113 = sld [smem:[#allocation4 + %s111]]
      %s114 = scalar_lea.vmem %s2, %s112
      %v115 = vld [vmem:[%s114] sm:$0x1]
      %s116 = scalar_lea.vmem [#allocation5], %s110
      %117 = vst.msk [vmem:[%s116] sm:$0x1] %vm44, %v115
      %s118 = scalar_lea.vmem %s3, %s113
      %v119 = vld [vmem:[%s118] sm:$0x1]
      %s120 = scalar_lea.vmem [#allocation7], %s110
      %121 = vst.msk [vmem:[%s120] sm:$0x1] %vm44, %v119
      %s122 = sadd.s32 %s37, 7
      %s123 = sadd.s32 %s30, %s122
      %s124 = sld [smem:[#allocation3 + %s123]]
      %s125 = sld [smem:[#allocation4 + %s123]]
      %s126 = scalar_lea.vmem %s2, %s124
      %v127 = vld [vmem:[%s126] sm:$0x1]
      %s128 = scalar_lea.vmem [#allocation5], %s122
      %129 = vst.msk [vmem:[%s128] sm:$0x1] %vm44, %v127
      %s130 = scalar_lea.vmem %s3, %s125
      %v131 = vld [vmem:[%s130] sm:$0x1]
      %s132 = scalar_lea.vmem [#allocation7], %s122
      %133 = vst.msk [vmem:[%s132] sm:$0x1] %vm44, %v131
    $region14: #{tpu_custom_call.1} parent=1 // loop_footer
      %s36 = sadd.s32 1, %s32
    $region15: #{tpu_custom_call.1} parent=1 // loop_footer_branch
      %31 = sbr.rel target = $region11
    $region16: #{tpu_custom_call.1} parent=1 // loop_exit
      _
    // Predicated region
    $region17: #{tpu_custom_call.1} parent=1 // pred_check
      _
    $region18: #{tpu_custom_call.1} parent=1 // pred_check_branch
      %135 = sbr.rel (0) target = $region20
    $region19: #{tpu_custom_call.1} parent=1 // pred_region
      %137 = vsyncadd [#allocation6], 0
      %s138 = sshll.u32 [#allocation5], 4
      %s139 = int_to_ptr.vmem [resolvable:$true] %s138
      %s140 = sshll.u32 %s4, 4
      %s141 = int_to_ptr.hbm [resolvable:$true] %s140
      %146 = dma.vmem_to_hbm [thread:$0]  %s139, 256, %s141, [#allocation6], 128, 128, 8
    $region20: #{tpu_custom_call.1} parent=1 // pred_fallthru
      _
    // Predicated region
    $region21: #{tpu_custom_call.1} parent=1 // pred_check
      _
    $region22: #{tpu_custom_call.1} parent=1 // pred_check_branch
      %148 = sbr.rel (0) target = $region24
    $region23: #{tpu_custom_call.1} parent=1 // pred_region
      %150 = vsyncadd [#allocation8], 0
      %s151 = sshll.u32 [#allocation7], 4
      %s152 = int_to_ptr.vmem [resolvable:$true] %s151
      %s153 = sshll.u32 %s5, 4
      %s154 = int_to_ptr.hbm [resolvable:$true] %s153
      %159 = dma.vmem_to_hbm [thread:$0]  %s152, 256, %s154, [#allocation8], 128, 128, 8
    $region24: #{tpu_custom_call.1} parent=1 // pred_fallthru
      _
    // Predicated region
    $region25: #{tpu_custom_call.1} parent=1 // pred_check
      _
    $region26: #{tpu_custom_call.1} parent=1 // pred_check_branch
      %161 = sbr.rel (0) target = $region28
    $region27: #{tpu_custom_call.1} parent=1 // pred_region
      %163 = dma.done [#allocation6], 256
    $region28: #{tpu_custom_call.1} parent=1 // pred_fallthru
      _
    // Predicated region
    $region29: #{tpu_custom_call.1} parent=1 // pred_check
      _
    $region30: #{tpu_custom_call.1} parent=1 // pred_check_branch
      %165 = sbr.rel (0) target = $region32
    $region31: #{tpu_custom_call.1} parent=1 // pred_region
      %167 = dma.done [#allocation8], 256
    $region32: #{tpu_custom_call.1} parent=1 // pred_fallthru
      _
    %168 = vsyncpa [#allocation6], 1
    %169 = vsyncpa [#allocation8], 1

</llo_original>
